<compile_context>
chip_gen: v7x
topology: tpu7x:2x2x1
jax: 0.10.0
libtpu: 0.0.40
codegen_flags: <defaults>
</compile_context>

<pallas_src>
import functools

import jax
import jax.numpy as jnp
from jax.experimental import pallas as pl
from jax.experimental.pallas import tpu as pltpu

LANES = 128
SUBLANES = 8


def _chip_config():
    """Chip-dependent tile size / VMEM budget (conservative fallback otherwise)."""
    try:
        kind = jax.devices()[0].device_kind.lower()
    except Exception:
        kind = ""
    if "v7" in kind or "7x" in kind:
        # v7x: 64 MiB VMEM/TC, 2 TCs/chip, 3.2 TB/s HBM.
        return dict(max_tile_rows=16384, vmem_limit=60 * 1024 * 1024, two_cores=True)
    if "v4" in kind or "v5" in kind or "v6" in kind:
        # 128 MiB VMEM parts: 8 MiB input blocks + elementwise temporaries fit easily.
        return dict(max_tile_rows=16384, vmem_limit=80 * 1024 * 1024, two_cores=False)
    # Unknown / older chip: previously-validated conservative settings.
    return dict(max_tile_rows=8192, vmem_limit=32 * 1024 * 1024, two_cores=False)


def _sumsq_kernel(gen_ref, gt_ref, out_ref, *, tile_rows, steps_per_split,
                  total_rows, acc_rows, may_overrun):
    """Accumulate sum((gen - gt)^2) for this core's row range into out_ref."""
    c = pl.program_id(0)   # core split ("parallel" axis)
    i = pl.program_id(1)   # streaming step within the split ("arbitrary" axis)

    @pl.when(i == 0)
    def _():
        out_ref[...] = jnp.zeros_like(out_ref)

    d = gen_ref[...].astype(jnp.float32) - gt_ref[...].astype(jnp.float32)
    sq = d * d   # |(a-b)^2| == (a-b)^2 for real inputs; abs dropped (no-op)

    def accum(vals):
        # (tile_rows, 128) -> (tile_rows/acc_rows, acc_rows, 128) regroups rows on
        # vreg boundaries (free); the axis-0 sum is acc_rows/8 independent VPU add
        # chains into acc_rows/8 resident accumulator vregs (no long serial chain).
        out_ref[0] += vals.reshape(-1, acc_rows, LANES).sum(axis=0)

    if not may_overrun:
        # Fast path: every block is fully in bounds -> zero mask work.
        accum(sq)
    else:
        blk = c * steps_per_split + i
        n_full_blocks = total_rows // tile_rows   # static Python int

        @pl.when(blk < n_full_blocks)
        def _():
            accum(sq)                              # hot path: unmasked

        @pl.when(blk >= n_full_blocks)
        def _():
            # Cold path: partial last block and/or clamped duplicate block.
            # Compare the step-invariant local iota against the scalar count of
            # valid rows (<= 0 for duplicates); select (not multiply) so garbage
            # or NaNs in the out-of-bounds region cannot leak in.
            local_row = jax.lax.broadcasted_iota(jnp.int32, (tile_rows, LANES), 0)
            valid_rows = total_rows - blk * tile_rows
            accum(jnp.where(local_row < valid_rows, sq, 0.0))


def _pallas_sumsq_2d(gen2d, gt2d):
    rows = gen2d.shape[0]
    cfg = _chip_config()

    # tile_rows: multiple of 8, <= rows (caller guarantees rows >= 8).
    tile_rows = min(cfg["max_tile_rows"], (rows // SUBLANES) * SUBLANES)
    n_blocks = pl.cdiv(rows, tile_rows)

    # Split across TensorCores only on 2-TC chips (v7x); on 1-TC parts a 2-way
    # split only risks a wasted duplicate-block HBM read.
    n_split = 2 if (cfg["two_cores"] and n_blocks >= 2) else 1
    steps = pl.cdiv(n_blocks, n_split)

    # K = acc_rows/8 independent accumulator vregs; widest that divides tile_rows.
    acc_groups = next(k for k in (8, 4, 2, 1) if tile_rows % (k * SUBLANES) == 0)
    acc_rows = acc_groups * SUBLANES

    # Masking is only needed when the grid overruns the array (partial last block
    # or a clamped duplicate block when n_blocks doesn't split evenly).
    may_overrun = (n_split * steps > n_blocks) or (rows % tile_rows != 0)

    def in_map(c, i):
        # Clamp so a core never requests a block index past the array; any
        # duplicated contribution is zeroed by the in-kernel mask.
        return (jnp.minimum(c * steps + i, n_blocks - 1), 0)

    kernel = functools.partial(
        _sumsq_kernel, tile_rows=tile_rows, steps_per_split=steps,
        total_rows=rows, acc_rows=acc_rows, may_overrun=may_overrun)

    partials = pl.pallas_call(
        kernel,
        out_shape=jax.ShapeDtypeStruct((n_split, acc_rows, LANES), jnp.float32),
        grid_spec=pltpu.PrefetchScalarGridSpec(
            num_scalar_prefetch=0,
            grid=(n_split, steps),
            in_specs=[
                pl.BlockSpec((tile_rows, LANES), in_map),
                pl.BlockSpec((tile_rows, LANES), in_map),
            ],
            out_specs=pl.BlockSpec((1, acc_rows, LANES), lambda c, i: (c, 0, 0)),
        ),
        compiler_params=pltpu.CompilerParams(
            dimension_semantics=("parallel", "arbitrary"),
            vmem_limit_bytes=cfg["vmem_limit"],
        ),
    )(gen2d, gt2d)
    return jnp.sum(partials)


def intensity_loss(gen_frames: jax.Array, gt_frames: jax.Array) -> jax.Array:
    """mean(|(gen - gt)^2|) over all elements. Returns a float32 scalar."""
    assert gen_frames.shape == gt_frames.shape, "shape mismatch"
    n_elem = gen_frames.size
    gen_flat = gen_frames.reshape(-1)
    gt_flat = gt_frames.reshape(-1)

    rows = n_elem // LANES
    use_pallas = rows >= SUBLANES            # at least one (8,128) tile of work
    bulk = rows * LANES if use_pallas else 0

    total = jnp.zeros((), jnp.float32)
    if bulk < n_elem:
        # Ragged tail (< 128 elems, or everything if the input is tiny): plain JAX.
        dt = (gen_flat[bulk:].astype(jnp.float32)
              - gt_flat[bulk:].astype(jnp.float32))
        total = total + jnp.sum(dt * dt)
    if use_pallas:
        # Zero-copy lane-dense (rows, 128) view whenever n_elem % 128 == 0.
        # TODO(synk): on the rare non-128-aligned path the prefix slice may still
        # materialize a copy in HBM; avoiding it would need pl.ANY + manual DMA.
        gen_b = gen_flat if bulk == n_elem else gen_flat[:bulk]
        gt_b = gt_flat if bulk == n_elem else gt_flat[:bulk]
        total = total + _pallas_sumsq_2d(gen_b.reshape(rows, LANES),
                                         gt_b.reshape(rows, LANES))
    return total / jnp.float32(n_elem)


if __name__ == "__main__":
    key = jax.random.PRNGKey(0)
    k1, k2, k3, k4 = jax.random.split(key, 4)

    # NCHW, small shapes: batch=2, channels=4, spatial=16x16 (128-aligned path).
    gen = jax.random.normal(k1, (2, 4, 16, 16), dtype=jnp.float32)
    gt = jax.random.normal(k2, (2, 4, 16, 16), dtype=jnp.float32)
    loss = intensity_loss(gen, gt)
    jax.block_until_ready(loss)
    ref = jnp.mean(jnp.abs((gen - gt) ** 2))
    assert jnp.allclose(loss, ref, rtol=1e-5, atol=1e-6), (loss, ref)

    # Odd-sized case exercising the partial-last-block mask + plain-JAX tail path.
    gen_o = jax.random.normal(k3, (2, 3, 15, 17), dtype=jnp.float32)
    gt_o = jax.random.normal(k4, (2, 3, 15, 17), dtype=jnp.float32)
    loss_o = intensity_loss(gen_o, gt_o)
    jax.block_until_ready(loss_o)
    ref_o = jnp.mean(jnp.abs((gen_o - gt_o) ** 2))
    assert jnp.allclose(loss_o, ref_o, rtol=1e-5, atol=1e-6), (loss_o, ref_o)

    print("KERNEL_OK")
</pallas_src>

<mosaic_0001>
module attributes {stable_mosaic.version = 11 : i64} {
  func.func @_sumsq_kernel(%arg0: i32, %arg1: i32, %arg2: memref<16x128xf32, #tpu.memory_space<vmem>>, %arg3: memref<16x128xf32, #tpu.memory_space<vmem>>, %arg4: memref<1x16x128xf32, #tpu.memory_space<vmem>>) attributes {dimension_semantics = [#tpu.dimension_semantics<parallel>, #tpu.dimension_semantics<arbitrary>], iteration_bounds = array<i64: 1, 1>, scalar_prefetch = 0 : i64, scratch_operands = 0 : i64, tpu.core_type = #tpu.core_type<tc>, window_params = [{transform_indices = @transform_0, window_bounds = array<i64: 16, 128>}, {transform_indices = @transform_1, window_bounds = array<i64: 16, 128>}, {transform_indices = @transform_2, window_bounds = array<i64: 1, 16, 128>}]} {
    %c0_i32 = arith.constant 0 : i32
    %0 = arith.cmpi eq, %arg1, %c0_i32 : i32
    %1 = arith.extui %0 : i1 to i32
    %c0_i32_0 = arith.constant 0 : i32
    %2 = arith.cmpi ne, %1, %c0_i32_0 : i32
    scf.if %2 {
      %cst_10 = arith.constant 0.000000e+00 : f32
      %15 = vector.broadcast %cst_10 : f32 to vector<1x16x128xf32>
      %c0_11 = arith.constant 0 : index
      %c0_12 = arith.constant 0 : index
      %c0_13 = arith.constant 0 : index
      %16 = vector.load %arg4[%c0_11, %c0_12, %c0_13] : memref<1x16x128xf32, #tpu.memory_space<vmem>>, vector<1x16x128xf32>
      tpu.vector_store %arg4[%c0_11, %c0_12, %c0_13], %15 {strides = array<i32>} : memref<1x16x128xf32, #tpu.memory_space<vmem>>, vector<1x16x128xf32>,
    } else {
    }
    %c0 = arith.constant 0 : index
    %c0_1 = arith.constant 0 : index
    %3 = vector.load %arg2[%c0, %c0_1] : memref<16x128xf32, #tpu.memory_space<vmem>>, vector<16x128xf32>
    %c0_2 = arith.constant 0 : index
    %c0_3 = arith.constant 0 : index
    %4 = vector.load %arg3[%c0_2, %c0_3] : memref<16x128xf32, #tpu.memory_space<vmem>>, vector<16x128xf32>
    %5 = arith.subf %3, %4 : vector<16x128xf32>
    %6 = arith.mulf %5, %5 : vector<16x128xf32>
    %c0_4 = arith.constant 0 : index
    %c0_5 = arith.constant 0 : index
    %c0_6 = arith.constant 0 : index
    %7 = vector.load %arg4[%c0_4, %c0_5, %c0_6] : memref<1x16x128xf32, #tpu.memory_space<vmem>>, vector<1x16x128xf32>
    %8 = vector.shape_cast %7 : vector<1x16x128xf32> to vector<16x128xf32>
    %9 = vector.shape_cast %6 : vector<16x128xf32> to vector<1x16x128xf32>
    %cst = arith.constant dense<0.000000e+00> : vector<16x128xf32>
    %10 = vector.multi_reduction <add>, %9, %cst [0] : vector<1x16x128xf32> to vector<16x128xf32>
    %11 = arith.addf %8, %10 : vector<16x128xf32>
    %c0_7 = arith.constant 0 : index
    %c0_8 = arith.constant 0 : index
    %c0_9 = arith.constant 0 : index
    %12 = vector.load %arg4[%c0_7, %c0_8, %c0_9] : memref<1x16x128xf32, #tpu.memory_space<vmem>>, vector<1x16x128xf32>
    %13 = vector.shape_cast %12 : vector<1x16x128xf32> to vector<16x128xf32>
    %14 = vector.shape_cast %11 : vector<16x128xf32> to vector<1x16x128xf32>
    tpu.vector_store %arg4[%c0_7, %c0_8, %c0_9], %14 {strides = array<i32>} : memref<1x16x128xf32, #tpu.memory_space<vmem>>, vector<1x16x128xf32>,
    return
  }
  func.func @transform_0(%arg0: i32, %arg1: i32) -> (i32, i32) {
    %c1_i32 = arith.constant 1 : i32
    %0 = arith.muli %arg0, %c1_i32 : i32
    %1 = arith.addi %0, %arg1 : i32
    %c0_i32 = arith.constant 0 : i32
    %2 = arith.minsi %1, %c0_i32 : i32
    %c0_i32_0 = arith.constant 0 : i32
    %c0_i32_1 = arith.constant 0 : i32
    return %2, %c0_i32_0 : i32, i32
  }
  func.func @transform_1(%arg0: i32, %arg1: i32) -> (i32, i32) {
    %c1_i32 = arith.constant 1 : i32
    %0 = arith.muli %arg0, %c1_i32 : i32
    %1 = arith.addi %0, %arg1 : i32
    %c0_i32 = arith.constant 0 : i32
    %2 = arith.minsi %1, %c0_i32 : i32
    %c0_i32_0 = arith.constant 0 : i32
    %c0_i32_1 = arith.constant 0 : i32
    return %2, %c0_i32_0 : i32, i32
  }
  func.func @transform_2(%arg0: i32, %arg1: i32) -> (i32, i32, i32) {
    %c0_i32 = arith.constant 0 : i32
    %c0_i32_0 = arith.constant 0 : i32
    %c0_i32_1 = arith.constant 0 : i32
    return %arg0, %c0_i32, %c0_i32_0 : i32, i32, i32
  }
}

</mosaic_0001>

<llo_original>
// kernel: tpu_custom_call.1
$region0: #{tpu_custom_call.1}
  #allocation0 [shape = 'u32[]', space=smem, size = 0x4, offset = 0x4, fixed_abs, tag = 'smem constant byte address 0x4 - core index']
  #allocation1 [shape = 'u32[144,128]{1,0:T(1,128)}', space=vmem, size = 0x12000, scoped, tag = 'internal scratch']
  %s0 = inlined_call_operand.hbm [shape: f32[16,128], index: 0, kind: input, shape index: {}]
  %s1 = inlined_call_operand.hbm [shape: f32[16,128], index: 1, kind: input, shape index: {}]
  %s2 = inlined_call_operand.hbm [shape: f32[1,16,128], index: 2, kind: output, shape index: {}]
  %s3 = sld [smem:[#allocation0]]
  $region30: #{tpu_custom_call.1} parent=0
    _
  %s5 = ssub.s32 1, %s3
  %s6 = scalar_select 0, %s5, %s3
  $region1: #{tpu_custom_call.1} parent=0
    #allocation2 [shape = 'u8[8192]{0}', space=vmem, size = 0x2000, scoped, tag = 'input window, operand 0, single buffered']
    #allocation3 [shape = 's32[1]{0}', space=sflag, size = 0x4, scoped, tag = 'scoped memory for tpu_custom_call.1']
    #allocation4 [shape = 's32[1]{0}', space=sflag, size = 0x4, scoped, tag = 'scoped memory for tpu_custom_call.1']
    #allocation5 [shape = 'u8[8192]{0}', space=vmem, size = 0x2000, scoped, tag = 'input window, operand 1, single buffered']
    #allocation6 [shape = 's32[1]{0}', space=sflag, size = 0x4, scoped, tag = 'scoped memory for tpu_custom_call.1']
    #allocation7 [shape = 'u8[8192]{0}', space=vmem, size = 0x2000, scoped, tag = 'output window, operand 0, single buffered']
    %7 = vsyncpa [#allocation3], 0
    %8 = vsyncpa [#allocation6], 0
    %9 = vsyncpa [#allocation4], 0
    // Predicated region
    $region2: #{tpu_custom_call.1} parent=1 // pred_check
      _
    $region3: #{tpu_custom_call.1} parent=1 // pred_check_branch
      %11 = sbr.rel (0) target = $region5
    $region4: #{tpu_custom_call.1} parent=1 // pred_region
      %s12 = sadd.s32 0, 0
      %p13 = scmp.lt.s32.totalorder %s12, 0
      %s14 = scalar_select %p13, %s12, 0
      %s15 = smul.u32 2, %s14
      %s17 = ssub.s32 256, 256
      %18 = vsyncadd [#allocation3], %s17
      %s19 = smul.addr %s15, 128
      %s20 = scalar_lea.hbm %s0, %s19
      %s21 = sshll.u32 [#allocation2], 4
      %s22 = int_to_ptr.vmem [resolvable:$true] %s21
      %27 = dma.hbm_to_vmem [thread:$0]  %s20, 256, %s22, [#allocation3], 128, 128, 8
    $region5: #{tpu_custom_call.1} parent=1 // pred_fallthru
      _
    // Predicated region
    $region6: #{tpu_custom_call.1} parent=1 // pred_check
      _
    $region7: #{tpu_custom_call.1} parent=1 // pred_check_branch
      %29 = sbr.rel (0) target = $region9
    $region8: #{tpu_custom_call.1} parent=1 // pred_region
      %s30 = sadd.s32 0, 0
      %p31 = scmp.lt.s32.totalorder %s30, 0
      %s32 = scalar_select %p31, %s30, 0
      %s33 = smul.u32 2, %s32
      %s35 = ssub.s32 256, 256
      %36 = vsyncadd [#allocation6], %s35
      %s37 = smul.addr %s33, 128
      %s38 = scalar_lea.hbm %s1, %s37
      %s39 = sshll.u32 [#allocation5], 4
      %s40 = int_to_ptr.vmem [resolvable:$true] %s39
      %45 = dma.hbm_to_vmem [thread:$0]  %s38, 256, %s40, [#allocation6], 128, 128, 8
    $region9: #{tpu_custom_call.1} parent=1 // pred_fallthru
      _
    // Predicated region
    $region10: #{tpu_custom_call.1} parent=1 // pred_check
      _
    $region11: #{tpu_custom_call.1} parent=1 // pred_check_branch
      %47 = sbr.rel (0) target = $region13
    $region12: #{tpu_custom_call.1} parent=1 // pred_region
      %48 = dma.done [#allocation3], 256
    $region13: #{tpu_custom_call.1} parent=1 // pred_fallthru
      _
    // Predicated region
    $region14: #{tpu_custom_call.1} parent=1 // pred_check
      _
    $region15: #{tpu_custom_call.1} parent=1 // pred_check_branch
      %50 = sbr.rel (0) target = $region17
    $region16: #{tpu_custom_call.1} parent=1 // pred_region
      %51 = dma.done [#allocation6], 256
    $region17: #{tpu_custom_call.1} parent=1 // pred_fallthru
      _
    %s52 = sadd.s32 0, 0
    %p53 = scmp.lt.s32.totalorder %s52, 0
    %s54 = scalar_select %p53, %s52, 0
    %s55 = smul.u32 2, %s54
    %s56 = sadd.s32 0, 0
    %p57 = scmp.lt.s32.totalorder %s56, 0
    %s58 = scalar_select %p57, %s56, 0
    %s59 = smul.u32 2, %s58
    %p60 = scmp.eq.s32.totalorder 0, 0
    // Predicated region
    $region18: #{tpu_custom_call.1} parent=1 // pred_check
      %p61 = pneg %p60
    $region19: #{tpu_custom_call.1} parent=1 // pred_check_branch
      %63 = sbr.rel (%p61) target = $region21
    $region20: #{tpu_custom_call.1} parent=1 // pred_region
      %64 = vst [vmem:[#allocation7] sm:$0xff] 0.0
      %65 = vst [vmem:[#allocation7 + $0x8] sm:$0xff] 0.0
    $region21: #{tpu_custom_call.1} parent=1 // pred_fallthru
      _
    %v66 = vld [vmem:[#allocation2] sm:$0xff]
    %v67 = vld [vmem:[#allocation2 + $0x8] sm:$0xff]
    %v68 = vld [vmem:[#allocation5] sm:$0xff]
    %v69 = vld [vmem:[#allocation5 + $0x8] sm:$0xff]
    %v70 = vsub.f32 %v66, %v68
    %v71 = vsub.f32 %v67, %v69
    %v72 = vmul.f32 %v70, %v70
    %v73 = vmul.f32 %v71, %v71
    %v74 = vld [vmem:[#allocation7] sm:$0xff]
    %v75 = vld [vmem:[#allocation7 + $0x8] sm:$0xff]
    %v76 = vadd.f32 %v72, 0.0
    %v77 = vadd.f32 %v73, 0.0
    %v78 = vadd.f32 %v74, %v76
    %v79 = vadd.f32 %v75, %v77
    %80 = vst [vmem:[#allocation7] sm:$0xff] %v78
    %81 = vst [vmem:[#allocation7 + $0x8] sm:$0xff] %v79
    // Predicated region
    $region22: #{tpu_custom_call.1} parent=1 // pred_check
      _
    $region23: #{tpu_custom_call.1} parent=1 // pred_check_branch
      %83 = sbr.rel (0) target = $region25
    $region24: #{tpu_custom_call.1} parent=1 // pred_region
      %s85 = ssub.s32 256, 256
      %86 = vsyncadd [#allocation4], %s85
      %s87 = sshll.u32 [#allocation7], 4
      %s88 = int_to_ptr.vmem [resolvable:$true] %s87
      %93 = dma.vmem_to_hbm [thread:$0]  %s88, 256, %s2, [#allocation4], 128, 128, 8
    $region25: #{tpu_custom_call.1} parent=1 // pred_fallthru
      _
    // Predicated region
    $region26: #{tpu_custom_call.1} parent=1 // pred_check
      _
    $region27: #{tpu_custom_call.1} parent=1 // pred_check_branch
      %95 = sbr.rel (0) target = $region29
    $region28: #{tpu_custom_call.1} parent=1 // pred_region
      %96 = dma.done [#allocation4], 256
    $region29: #{tpu_custom_call.1} parent=1 // pred_fallthru
      _
    %97 = vsyncpa [#allocation3], 1
    %98 = vsyncpa [#allocation6], 1
    %99 = vsyncpa [#allocation4], 1

</llo_original>
